<compile_context>
chip_gen: v6e
topology: v6e:2x2x1
jax: 0.10.0
libtpu: 0.0.40
codegen_flags: <defaults>
</compile_context>

<pallas_src>
import functools
import math

import jax
import jax.numpy as jnp
from jax.experimental import pallas as pl
from jax.experimental.pallas import tpu as pltpu


def _linear_kernel(x_ref, w_ref, b_ref, o_ref):
    # x_ref: (tm, c_in)  w_ref: (c_in, tn)  b_ref: (1, tn)  o_ref: (tm, tn)
    acc = jnp.dot(x_ref[...], w_ref[...], preferred_element_type=jnp.float32)
    o_ref[...] = (acc + b_ref[...]).astype(o_ref.dtype)


def _round_up(x, m):
    return ((x + m - 1) // m) * m


def _pick_tile(requested, total, step):
    """Largest multiple of `step` that is <= min(requested, total) and divides `total`.

    `total` is assumed to be a multiple of `step`, so this always terminates.
    """
    t = min(requested, total)
    t = max((t // step) * step, step)
    while total % t:
        t -= step
    return t


@functools.partial(jax.jit, static_argnames=("tm", "tn", "compute_dtype"))
def token_embedding(x, weight, bias, *, tm=512, tn=512, compute_dtype=None):
    """y = x @ weight.T + bias, same semantics as nn.Linear(c_in, d_model).

    x:      (..., c_in)
    weight: (d_model, c_in)   -- PyTorch Linear layout
    bias:   (d_model,)
    returns (..., d_model) in x.dtype
    """
    *lead, c_in = x.shape
    d_model = weight.shape[0]
    out_dtype = x.dtype

    cdt = jnp.dtype(compute_dtype) if compute_dtype is not None else jnp.dtype(x.dtype)
    # Sublane granularity for the compute dtype (f32 -> 8, bf16 -> 16, int8 -> 32).
    sub = max(8, 32 // cdt.itemsize)

    m = math.prod(lead) if lead else 1
    x2d = x.reshape(m, c_in).astype(cdt)

    # --- M (row) tiling: pad minimally to the sublane granularity, then pick a
    # tile that divides the padded M exactly (no ragged last tile).
    m_pad = _round_up(m, sub)
    tm_eff = _pick_tile(tm, m_pad, sub)
    if m_pad != m:
        x2d = jnp.pad(x2d, ((0, m_pad - m), (0, 0)))

    # --- N (d_model) tiling: pad once to a multiple of 128 lanes so every
    # output store is lane-dense, then pick a dividing tile.
    d_pad = _round_up(d_model, 128)
    tn_eff = _pick_tile(tn, d_pad, 128)

    w = weight.astype(cdt).T                      # (c_in, d_model), tiny transpose
    if d_pad != d_model:
        w = jnp.pad(w, ((0, 0), (0, d_pad - d_model)))
        b = jnp.pad(bias.astype(jnp.float32), (0, d_pad - d_model))
    else:
        b = bias.astype(jnp.float32)
    b = b.reshape(1, d_pad)

    # --- VMEM budget: double-buffered x / W / bias / output tiles, with
    # headroom, capped under v7x's 64 MiB physical VMEM.
    xb = cdt.itemsize
    ob = jnp.dtype(out_dtype).itemsize
    est = 2 * (tm_eff * c_in * xb + c_in * tn_eff * xb + tn_eff * 4
               + tm_eff * tn_eff * ob)
    vmem_limit = int(min(max(4 * est, 32 * 1024 * 1024), 64 * 1024 * 1024))

    grid = (m_pad // tm_eff, d_pad // tn_eff)

    out = pl.pallas_call(
        _linear_kernel,
        out_shape=jax.ShapeDtypeStruct((m_pad, d_pad), out_dtype),
        grid_spec=pltpu.PrefetchScalarGridSpec(
            num_scalar_prefetch=0,
            grid=grid,
            in_specs=[
                pl.BlockSpec((tm_eff, c_in), lambda i, j: (i, 0)),   # x row tile
                pl.BlockSpec((c_in, tn_eff), lambda i, j: (0, j)),   # W column tile
                pl.BlockSpec((1, tn_eff), lambda i, j: (0, j)),      # bias tile
            ],
            out_specs=pl.BlockSpec((tm_eff, tn_eff), lambda i, j: (i, j)),
        ),
        compiler_params=pltpu.CompilerParams(
            dimension_semantics=("parallel", "parallel"),
            vmem_limit_bytes=vmem_limit,
        ),
    )(x2d, w, b)

    if m_pad != m:
        out = out[:m]
    if d_pad != d_model:
        out = out[:, :d_model]
    return out.reshape(*lead, d_model)


if __name__ == "__main__":
    # Shapes implied by the module: x: (batch, seq, c_in) -> (batch, seq, d_model)
    batch, seq, c_in, d_model = 2, 8, 4, 32

    key = jax.random.PRNGKey(0)
    kx, kw, kb = jax.random.split(key, 3)

    x = jax.random.normal(kx, (batch, seq, c_in), dtype=jnp.float32)
    # Deterministic synthetic parameters (nn.Linear(c_in, d_model) shapes).
    weight = jax.random.normal(kw, (d_model, c_in), dtype=jnp.float32) * 0.1
    bias = jax.random.normal(kb, (d_model,), dtype=jnp.float32) * 0.1

    # bf16 compute (f32 accumulation + f32 bias add inside the kernel).
    y = token_embedding(x, weight, bias, compute_dtype=jnp.bfloat16)
    y = jax.block_until_ready(y)
    assert y.shape == (batch, seq, d_model)
    assert y.dtype == x.dtype

    # Reference with identical bf16 inputs and f32 accumulation (matches kernel math).
    xb_ = x.astype(jnp.bfloat16)
    wb_ = weight.astype(jnp.bfloat16)
    y_ref = jnp.einsum("bsc,dc->bsd", xb_, wb_,
                       preferred_element_type=jnp.float32) + bias
    assert jnp.allclose(y, y_ref, atol=1e-4, rtol=1e-4), float(jnp.max(jnp.abs(y - y_ref)))

    # Sanity: close to the full-f32 nn.Linear result as well.
    y_f32 = x @ weight.T + bias
    assert jnp.allclose(y, y_f32, atol=5e-2, rtol=5e-2)

    print("KERNEL_OK")
</pallas_src>

<mosaic_0001>
module attributes {stable_mosaic.version = 11 : i64} {
  func.func @_linear_kernel(%arg0: i32, %arg1: i32, %arg2: memref<16x4xbf16, #tpu.memory_space<vmem>>, %arg3: memref<4x128xbf16, #tpu.memory_space<vmem>>, %arg4: memref<1x128xf32, #tpu.memory_space<vmem>>, %arg5: memref<16x128xf32, #tpu.memory_space<vmem>>) attributes {dimension_semantics = [#tpu.dimension_semantics<parallel>, #tpu.dimension_semantics<parallel>], iteration_bounds = array<i64: 1, 1>, scalar_prefetch = 0 : i64, scratch_operands = 0 : i64, tpu.core_type = #tpu.core_type<tc>, window_params = [{transform_indices = @transform_0, window_bounds = array<i64: 16, 4>}, {transform_indices = @transform_1, window_bounds = array<i64: 4, 128>}, {transform_indices = @transform_2, window_bounds = array<i64: 1, 128>}, {transform_indices = @transform_3, window_bounds = array<i64: 16, 128>}]} {
    %c0 = arith.constant 0 : index
    %c0_0 = arith.constant 0 : index
    %0 = vector.load %arg2[%c0, %c0_0] : memref<16x4xbf16, #tpu.memory_space<vmem>>, vector<16x4xbf16>
    %c0_1 = arith.constant 0 : index
    %c0_2 = arith.constant 0 : index
    %1 = vector.load %arg3[%c0_1, %c0_2] : memref<4x128xbf16, #tpu.memory_space<vmem>>, vector<4x128xbf16>
    %cst = arith.constant dense<0.000000e+00> : vector<16x128xf32>
    %2 = tpu.matmul %0, %1, %cst {dimension_numbers = #tpu.dot_dimension_numbers<[1], [0], [0], [1], [0, 0, 1, 1], [], []>} : vector<16x4xbf16>, vector<4x128xbf16>, vector<16x128xf32> -> vector<16x128xf32>
    %c0_3 = arith.constant 0 : index
    %c0_4 = arith.constant 0 : index
    %3 = vector.load %arg4[%c0_3, %c0_4] : memref<1x128xf32, #tpu.memory_space<vmem>>, vector<1x128xf32>
    %4 = vector.broadcast %3 : vector<1x128xf32> to vector<16x128xf32>
    %5 = arith.addf %2, %4 : vector<16x128xf32>
    %c0_5 = arith.constant 0 : index
    %c0_6 = arith.constant 0 : index
    %6 = vector.load %arg5[%c0_5, %c0_6] : memref<16x128xf32, #tpu.memory_space<vmem>>, vector<16x128xf32>
    tpu.vector_store %arg5[%c0_5, %c0_6], %5 {strides = array<i32>} : memref<16x128xf32, #tpu.memory_space<vmem>>, vector<16x128xf32>,
    return
  }
  func.func @transform_0(%arg0: i32, %arg1: i32) -> (i32, i32) {
    %c0_i32 = arith.constant 0 : i32
    %c0_i32_0 = arith.constant 0 : i32
    return %arg0, %c0_i32 : i32, i32
  }
  func.func @transform_1(%arg0: i32, %arg1: i32) -> (i32, i32) {
    %c0_i32 = arith.constant 0 : i32
    %c0_i32_0 = arith.constant 0 : i32
    return %c0_i32, %arg1 : i32, i32
  }
  func.func @transform_2(%arg0: i32, %arg1: i32) -> (i32, i32) {
    %c0_i32 = arith.constant 0 : i32
    %c0_i32_0 = arith.constant 0 : i32
    return %c0_i32, %arg1 : i32, i32
  }
  func.func @transform_3(%arg0: i32, %arg1: i32) -> (i32, i32) {
    %c0_i32 = arith.constant 0 : i32
    return %arg0, %arg1 : i32, i32
  }
}

</mosaic_0001>

<llo_original>
// kernel: token_embedding.1
$region0: #{token_embedding.1}
  #allocation0 [shape = 'u32[]', space=smem, size = 0x4, offset = 0x4, fixed_abs, tag = 'smem constant byte address 0x4 - core index']
  #allocation1 [shape = 'u32[144,128]{1,0:T(1,128)}', space=vmem, size = 0x12000, scoped, tag = 'internal scratch']
  %s0 = inlined_call_operand.vmem [shape: bf16[16,4], index: 0, kind: input, shape index: {}]
  %s1 = inlined_call_operand.vmem [shape: bf16[4,128], index: 1, kind: input, shape index: {}]
  %s2 = inlined_call_operand.vmem [shape: f32[1,128], index: 2, kind: input, shape index: {}]
  %s3 = inlined_call_operand.vmem [shape: f32[16,128], index: 3, kind: output, shape index: {}]
  %s4 = sld [smem:[#allocation0]]
  $region22: #{token_embedding.1} parent=0
    _
  %s6 = ssub.s32 1, %s4
  %s7 = scalar_select 0, %s6, %s4
  // Predicated region
  $region2: #{token_embedding.1} parent=0 // pred_check
    _
  $region3: #{token_embedding.1} parent=0 // pred_check_branch
    %9 = sbr.rel (0) target = $region5
  $region4: #{token_embedding.1} parent=0 // pred_region
    _
  $region5: #{token_embedding.1} parent=0 // pred_fallthru
    _
  // Predicated region
  $region6: #{token_embedding.1} parent=0 // pred_check
    _
  $region7: #{token_embedding.1} parent=0 // pred_check_branch
    %11 = sbr.rel (0) target = $region9
  $region8: #{token_embedding.1} parent=0 // pred_region
    _
  $region9: #{token_embedding.1} parent=0 // pred_fallthru
    _
  // Predicated region
  $region10: #{token_embedding.1} parent=0 // pred_check
    _
  $region11: #{token_embedding.1} parent=0 // pred_check_branch
    %13 = sbr.rel (0) target = $region13
  $region12: #{token_embedding.1} parent=0 // pred_region
    _
  $region13: #{token_embedding.1} parent=0 // pred_fallthru
    _
  %v15 = vld [vmem:[%s0] sm:$0xf]
  %v16 = vld [vmem:[%s0 + $0x4] sm:$0xf]
  %v17 = vld [vmem:[%s1] sm:$0x3]
  %v18 = vld [vmem:[%s2] sm:$0x1]
  %v20 = vlaneseq
  %v21 = vshrl.u32 %v20, 7
  %v22 = vsub.s32 0, %v21
  %v23 = vrot.slane %v18, %v22
  %v27 = vunpack.c.l.b16 %v15
  %v28 = vunpack.c.l.b16 %v16
  %v29 = vpack.c.b16 %v28, %v27
  %vm30 = vcmask 31744
  %v32 = vsel %vm30, %v29, 0
  %vm34 = vcmask 1041408
  %v36 = vsel %vm34, %v17, 0
  %38 = vmatprep.subr.bf16.mxu0 0
  %39 = vmatpush1.bf16.msra.mxu0 0
  %40 = vmatprep.subr.bf16.mxu0 0
  %41 = vmatpush1.bf16.msra.mxu0 0
  %42 = vmatprep.subr.bf16.mxu0 0
  %43 = vmatpush1.bf16.msra.mxu0 0
  %44 = vmatprep.subr.bf16.mxu0 0
  %45 = vmatpush1.bf16.msra.mxu0 0
  %46 = vmatprep.subr.bf16.mxu0 0
  %47 = vmatpush1.bf16.msra.mxu0 0
  %48 = vmatprep.subr.bf16.mxu0 0
  %49 = vmatpush1.bf16.msra.mxu0 0
  %50 = vmatprep.subr.bf16.mxu0 0
  %51 = vmatpush1.bf16.msra.mxu0 0
  %52 = vmatprep.subr.bf16.mxu0 0
  %53 = vmatpush1.bf16.msra.mxu0 %v36
  %54 = vmatprep.subr.bf16.mxu0 0
  %55 = vmatpush2.bf16.msra.mxu0 0
  %56 = vmatprep.subr.bf16.mxu0 0
  %57 = vmatpush2.bf16.msra.mxu0 0
  %58 = vmatprep.subr.bf16.mxu0 0
  %59 = vmatpush2.bf16.msra.mxu0 0
  %60 = vmatprep.subr.bf16.mxu0 0
  %61 = vmatpush2.bf16.msra.mxu0 0
  %62 = vmatprep.subr.bf16.mxu0 0
  %63 = vmatpush2.bf16.msra.mxu0 0
  %64 = vmatprep.subr.bf16.mxu0 0
  %65 = vmatpush2.bf16.msra.mxu0 0
  %66 = vmatprep.subr.bf16.mxu0 0
  %67 = vmatpush2.bf16.msra.mxu0 0
  %68 = vmatprep.subr.bf16.mxu0 0
  %69 = vmatpush2.bf16.msra.mxu0 0
  %70 = vmatprep.mubr.bf16.mxu0 0
  %71 = vmatmul.mubr.bf16.gmra.mxu0 %v32
  %v72 = vpop.f32.mrf.mxu0
  %v73 = vadd.f32 %v23, %v72
  %v74 = vpop.f32.mrf.mxu0
  %v75 = vpop.f32.mrf.mxu0
  %v76 = vadd.f32 %v23, %v75
  %v77 = vpop.f32.mrf.mxu0
  %78 = vdwg.mxu0
  %79 = vst [vmem:[%s3] sm:$0xff] %v73
  %80 = vst [vmem:[%s3 + $0x8] sm:$0xff] %v76
  // Predicated region
  $region14: #{token_embedding.1} parent=0 // pred_check
    _
  $region15: #{token_embedding.1} parent=0 // pred_check_branch
    %82 = sbr.rel (0) target = $region17
  $region16: #{token_embedding.1} parent=0 // pred_region
    _
  $region17: #{token_embedding.1} parent=0 // pred_fallthru
    _
  // Predicated region
  $region18: #{token_embedding.1} parent=0 // pred_check
    _
  $region19: #{token_embedding.1} parent=0 // pred_check_branch
    %84 = sbr.rel (0) target = $region21
  $region20: #{token_embedding.1} parent=0 // pred_region
    _
  $region21: #{token_embedding.1} parent=0 // pred_fallthru
    _

</llo_original>
